<compile_context>
chip_gen: v6e
topology: v6e:2x2x1
jax: 0.10.0
libtpu: 0.0.40
codegen_flags: <defaults>
</compile_context>

<pallas_src>
import functools

import numpy as np
import jax
import jax.numpy as jnp
from jax.experimental import pallas as pl
from jax.experimental.pallas import tpu as pltpu


def interp_matrix(in_size: int, out_size: int) -> np.ndarray:
    """Row-stochastic (out_size, in_size) matrix M s.t. y = M @ x is 1-D bilinear
    interpolation with align_corners=True (PyTorch semantics). numpy -> constant-folded."""
    if out_size == 1 or in_size == 1:
        m = np.zeros((out_size, in_size), np.float32)
        m[:, 0] = 1.0
        return m
    src = np.arange(out_size, dtype=np.float64) * (in_size - 1) / (out_size - 1)
    lo = np.clip(np.floor(src).astype(np.int64), 0, in_size - 2)
    frac = (src - lo).astype(np.float32)
    m = np.zeros((out_size, in_size), np.float32)
    rows = np.arange(out_size)
    m[rows, lo] += 1.0 - frac
    m[rows, lo + 1] += frac
    return m


def _upsample_kernel(w_ref, p_ref, k_ref, o_ref):
    # w_ref : (N, Cout, Cin*9)   conv weight replicated per batch (batched-matmul LHS)
    # p_ref : (N, Cin*9, H*W)    im2col patches, row order (cin, ky, kx)
    # k_ref : (H*W, Ho*Wo)       kron(ah, aw).T  == separable bilinear, align_corners=True
    # o_ref : (N*Cout, Ho*Wo)    lane-dense output (last dim multiple of 128)
    n, cout, _ = w_ref.shape
    hw = p_ref.shape[-1]

    # 3x3 conv as a single batched im2col matmul (batch dim = N).
    conv = jax.lax.dot_general(
        w_ref[...], p_ref[...],
        dimension_numbers=(((2,), (1,)), ((0,), (0,))),
        preferred_element_type=jnp.float32)                      # (N, Cout, H*W)

    # Leading-dim merge only: layout-trivial (sublane dim 8 -> 16, lane dim unchanged).
    conv2d = conv.reshape(n * cout, hw)                          # (N*Cout, H*W)

    # Fused separable bilinear upsample: one big MXU matmul, lane-dense result.
    o_ref[...] = jnp.dot(conv2d.astype(k_ref.dtype), k_ref[...],
                         preferred_element_type=jnp.float32).astype(o_ref.dtype)


@functools.partial(jax.jit, static_argnames=("factor",))
def upsample2d_forward(x_nchw, weight, factor: int = 2):
    """Equivalent of Upsample2d.forward.

    x_nchw : (N, Cin, H, W) float32
    weight : (Cout, Cin, 3, 3) float32   (Conv2d weight, bias=False)
    returns: (N, Cout, H*factor, W*factor) float32
    """
    N, Cin, H, W = x_nchw.shape
    Cout = weight.shape[0]
    Ho, Wo = int(H * factor), int(W * factor)

    # ---- glue (tiny data, fused by XLA under jit): im2col + weight reshuffle ----
    x_pad = jnp.pad(x_nchw, ((0, 0), (0, 0), (1, 1), (1, 1)))          # (N, Cin, H+2, W+2)
    taps = [x_pad[:, :, ky:ky + H, kx:kx + W] for ky in range(3) for kx in range(3)]
    # (N, Cin, 9, H, W) -> (N, Cin*9, H*W); row order (cin, ky, kx) matches
    # weight.reshape(Cout, Cin*9) column order.
    patches = jnp.stack(taps, axis=2).reshape(N, Cin * 9, H * W).astype(jnp.float32)

    w_mat = weight.reshape(Cout, Cin * 9).astype(jnp.float32)
    w_b = jnp.broadcast_to(w_mat[None], (N, Cout, Cin * 9))            # (N, Cout, Cin*9)

    # Constant separable-bilinear operator (numpy -> compile-time constant under jit).
    kmat = jnp.asarray(np.kron(interp_matrix(H, Ho),
                               interp_matrix(W, Wo)).T.astype(np.float32))   # (H*W, Ho*Wo)

    flops = (2 * N * Cout * (Cin * 9) * (H * W)          # conv matmul
             + 2 * (N * Cout) * (H * W) * (Ho * Wo))     # interp matmul
    bytes_accessed = 4 * (w_b.size + patches.size + kmat.size + N * Cout * Ho * Wo)

    out2d = pl.pallas_call(
        _upsample_kernel,
        out_shape=jax.ShapeDtypeStruct((N * Cout, Ho * Wo), jnp.float32),
        in_specs=[
            pl.BlockSpec(memory_space=pltpu.MemorySpace.VMEM),
            pl.BlockSpec(memory_space=pltpu.MemorySpace.VMEM),
            pl.BlockSpec(memory_space=pltpu.MemorySpace.VMEM),
        ],
        out_specs=pl.BlockSpec(memory_space=pltpu.MemorySpace.VMEM),
        cost_estimate=pl.CostEstimate(flops=flops, transcendentals=0,
                                      bytes_accessed=bytes_accessed),
    )(w_b, patches, kmat)

    # Row index is n*Cout + cout, so this reshape is a pure view change.
    return out2d.reshape(N, Cout, Ho, Wo).astype(x_nchw.dtype)


def reference(x_nchw, weight, factor: int = 2):
    """Pure-JAX reference of the same forward pass."""
    conv = jax.lax.conv_general_dilated(
        x_nchw, weight, window_strides=(1, 1), padding=((1, 1), (1, 1)),
        dimension_numbers=("NCHW", "OIHW", "NCHW"))
    _, _, H, W = conv.shape
    ah = jnp.asarray(interp_matrix(H, H * factor))
    aw = jnp.asarray(interp_matrix(W, W * factor))
    return jnp.einsum("ip,ncpq,jq->ncij", ah, conv, aw)


if __name__ == "__main__":
    # Module config: Upsample2d(in_channels=4, channels=8, factor=2)
    N, Cin, H, W = 2, 4, 16, 16
    Cout, factor = 8, 2

    key = jax.random.PRNGKey(0)
    kx_, kw_ = jax.random.split(key)
    x = jax.random.normal(kx_, (N, Cin, H, W), jnp.float32)
    # Deterministic conv weight (shape (Cout, Cin, 3, 3)), kaiming-like scale.
    weight = jax.random.normal(kw_, (Cout, Cin, 3, 3), jnp.float32) * (1.0 / (Cin * 9)) ** 0.5

    out = jax.block_until_ready(upsample2d_forward(x, weight, factor=factor))
    ref = jax.block_until_ready(reference(x, weight, factor=factor))

    assert out.shape == (N, Cout, H * factor, W * factor), out.shape
    assert jnp.allclose(out, ref, rtol=1e-3, atol=1e-3), float(jnp.max(jnp.abs(out - ref)))

    print("KERNEL_OK")
</pallas_src>

<mosaic_0001>
module attributes {stable_mosaic.version = 11 : i64} {
  func.func @_upsample_kernel(%arg0: memref<2x8x36xf32, #tpu.memory_space<vmem>>, %arg1: memref<2x36x256xf32, #tpu.memory_space<vmem>>, %arg2: memref<256x1024xf32, #tpu.memory_space<vmem>>, %arg3: memref<16x1024xf32, #tpu.memory_space<vmem>>) attributes {dimension_semantics = [], scalar_prefetch = 0 : i64, scratch_operands = 0 : i64, tpu.core_type = #tpu.core_type<tc>} {
    %c0 = arith.constant 0 : index
    %c0_0 = arith.constant 0 : index
    %c0_1 = arith.constant 0 : index
    %0 = vector.load %arg0[%c0, %c0_0, %c0_1] : memref<2x8x36xf32, #tpu.memory_space<vmem>>, vector<2x8x36xf32>
    %c0_2 = arith.constant 0 : index
    %c0_3 = arith.constant 0 : index
    %c0_4 = arith.constant 0 : index
    %1 = vector.load %arg1[%c0_2, %c0_3, %c0_4] : memref<2x36x256xf32, #tpu.memory_space<vmem>>, vector<2x36x256xf32>
    %cst = arith.constant dense<0.000000e+00> : vector<2x8x256xf32>
    %2 = tpu.matmul %0, %1, %cst {dimension_numbers = #tpu.dot_dimension_numbers<[2], [1], [1], [2], [0, 0, 0, 1, 1, 2], [0], [0]>} : vector<2x8x36xf32>, vector<2x36x256xf32>, vector<2x8x256xf32> -> vector<2x8x256xf32>
    %3 = vector.shape_cast %2 : vector<2x8x256xf32> to vector<16x256xf32>
    %c0_5 = arith.constant 0 : index
    %c0_6 = arith.constant 0 : index
    %4 = vector.load %arg2[%c0_5, %c0_6] : memref<256x1024xf32, #tpu.memory_space<vmem>>, vector<256x1024xf32>
    %cst_7 = arith.constant dense<0.000000e+00> : vector<16x1024xf32>
    %5 = tpu.matmul %3, %4, %cst_7 {dimension_numbers = #tpu.dot_dimension_numbers<[1], [0], [0], [1], [0, 0, 1, 1], [], []>} : vector<16x256xf32>, vector<256x1024xf32>, vector<16x1024xf32> -> vector<16x1024xf32>
    %c0_8 = arith.constant 0 : index
    %c0_9 = arith.constant 0 : index
    %6 = vector.load %arg3[%c0_8, %c0_9] : memref<16x1024xf32, #tpu.memory_space<vmem>>, vector<16x1024xf32>
    tpu.vector_store %arg3[%c0_8, %c0_9], %5 {strides = array<i32>} : memref<16x1024xf32, #tpu.memory_space<vmem>>, vector<16x1024xf32>,
    return
  }
}

</mosaic_0001>

<llo_original>
// kernel: upsample2d_forward.1
$region0: #{upsample2d_forward.1}
  #allocation0 [shape = 'u32[]', space=smem, size = 0x4, offset = 0x4, fixed_abs, tag = 'smem constant byte address 0x4 - core index']
  #allocation1 [shape = 'u32[144,128]{1,0:T(1,128)}', space=vmem, size = 0x12000, scoped, tag = 'internal scratch']
  %s0 = inlined_call_operand.vmem [shape: f32[2,8,36], index: 0, kind: input, shape index: {}]
  %s1 = inlined_call_operand.vmem [shape: f32[2,36,256], index: 1, kind: input, shape index: {}]
  %s2 = inlined_call_operand.vmem [shape: f32[256,1024], index: 2, kind: input, shape index: {}]
  %s3 = inlined_call_operand.vmem [shape: f32[16,1024], index: 3, kind: output, shape index: {}]
  %s4 = sld [smem:[#allocation0]]
  $region22: #{upsample2d_forward.1} parent=0
    _
  %s6 = ssub.s32 1, %s4
  %s7 = scalar_select 0, %s6, %s4
  // Predicated region
  $region2: #{upsample2d_forward.1} parent=0 // pred_check
    _
  $region3: #{upsample2d_forward.1} parent=0 // pred_check_branch
    %9 = sbr.rel (0) target = $region5
  $region4: #{upsample2d_forward.1} parent=0 // pred_region
    _
  $region5: #{upsample2d_forward.1} parent=0 // pred_fallthru
    _
  // Predicated region
  $region6: #{upsample2d_forward.1} parent=0 // pred_check
    _
  $region7: #{upsample2d_forward.1} parent=0 // pred_check_branch
    %11 = sbr.rel (0) target = $region9
  $region8: #{upsample2d_forward.1} parent=0 // pred_region
    _
  $region9: #{upsample2d_forward.1} parent=0 // pred_fallthru
    _
  // Predicated region
  $region10: #{upsample2d_forward.1} parent=0 // pred_check
    _
  $region11: #{upsample2d_forward.1} parent=0 // pred_check_branch
    %13 = sbr.rel (0) target = $region13
  $region12: #{upsample2d_forward.1} parent=0 // pred_region
    _
  $region13: #{upsample2d_forward.1} parent=0 // pred_fallthru
    _
  %v14 = vld [vmem:[%s0] sm:$0xff]
  %v15 = vld [vmem:[%s0 + $0x8] sm:$0xff]
  %v16 = vld [vmem:[%s1] sm:$0xff]
  %v17 = vld [vmem:[%s1 + $0x8] sm:$0xff]
  %v18 = vld [vmem:[%s1 + $0x10] sm:$0xff]
  %v19 = vld [vmem:[%s1 + $0x18] sm:$0xff]
  %v20 = vld [vmem:[%s1 + $0x20] sm:$0xff]
  %v21 = vld [vmem:[%s1 + $0x28] sm:$0xff]
  %v22 = vld [vmem:[%s1 + $0x30] sm:$0xff]
  %v23 = vld [vmem:[%s1 + $0x38] sm:$0xff]
  %v24 = vld [vmem:[%s1 + $0x40] sm:$0xf]
  %v25 = vld [vmem:[%s1 + $0x48] sm:$0xf]
  %v26 = vld [vmem:[%s1 + $0x50] sm:$0xff]
  %v27 = vld [vmem:[%s1 + $0x58] sm:$0xff]
  %v28 = vld [vmem:[%s1 + $0x60] sm:$0xff]
  %v29 = vld [vmem:[%s1 + $0x68] sm:$0xff]
  %v30 = vld [vmem:[%s1 + $0x70] sm:$0xff]
  %v31 = vld [vmem:[%s1 + $0x78] sm:$0xff]
  %v32 = vld [vmem:[%s1 + $0x80] sm:$0xff]
  %v33 = vld [vmem:[%s1 + $0x88] sm:$0xff]
  %v34 = vld [vmem:[%s1 + $0x90] sm:$0xf]
  %v35 = vld [vmem:[%s1 + $0x98] sm:$0xf]
  %vm36 = vcmask 293888
  %v38 = vsel %vm36, %v14, 0
  %vm40 = vcmask 1043456
  %v42 = vsel %vm40, %v24, 0
  %v45 = vsel %vm40, %v25, 0
  %47 = vmatprep.subr.mxu0 0.0
  %48 = vmatpush1.msra.mxu0 0.0
  %49 = vmatprep.subr.mxu0 0.0
  %50 = vmatpush1.msra.mxu0 0.0
  %51 = vmatprep.subr.mxu0 0.0
  %52 = vmatpush1.msra.mxu0 0.0
  %53 = vmatprep.subr.mxu0 0.0
  %54 = vmatpush1.msra.mxu0 0.0
  %55 = vmatprep.subr.mxu0 0.0
  %56 = vmatpush1.msra.mxu0 0.0
  %57 = vmatprep.subr.mxu0 0.0
  %58 = vmatpush1.msra.mxu0 0.0
  %59 = vmatprep.subr.mxu0 0.0
  %60 = vmatpush1.msra.mxu0 0.0
  %61 = vmatprep.subr.mxu0 0.0
  %62 = vmatpush1.msra.mxu0 0.0
  %63 = vmatprep.subr.mxu0 0.0
  %64 = vmatpush1.msra.mxu0 0.0
  %65 = vmatprep.subr.mxu0 0.0
  %66 = vmatpush1.msra.mxu0 0.0
  %67 = vmatprep.subr.mxu0 0.0
  %68 = vmatpush1.msra.mxu0 0.0
  %69 = vmatprep.subr.mxu0 %v45
  %70 = vmatpush1.msra.mxu0 %v42
  %71 = vmatprep.subr.mxu0 %v23
  %72 = vmatpush1.msra.mxu0 %v22
  %73 = vmatprep.subr.mxu0 %v21
  %74 = vmatpush1.msra.mxu0 %v20
  %75 = vmatprep.subr.mxu0 %v19
  %76 = vmatpush1.msra.mxu0 %v18
  %77 = vmatprep.subr.mxu0 %v17
  %78 = vmatpush1.msra.mxu0 %v16
  %79 = vmatprep.subr.mxu0 0.0
  %80 = vmatpush2.msra.mxu0 0.0
  %81 = vmatprep.subr.mxu0 0.0
  %82 = vmatpush2.msra.mxu0 0.0
  %83 = vmatprep.subr.mxu0 0.0
  %84 = vmatpush2.msra.mxu0 0.0
  %85 = vmatprep.subr.mxu0 0.0
  %86 = vmatpush2.msra.mxu0 0.0
  %87 = vmatprep.subr.mxu0 0.0
  %88 = vmatpush2.msra.mxu0 0.0
  %89 = vmatprep.subr.mxu0 0.0
  %90 = vmatpush2.msra.mxu0 0.0
  %91 = vmatprep.subr.mxu0 0.0
  %92 = vmatpush2.msra.mxu0 0.0
  %93 = vmatprep.subr.mxu0 0.0
  %94 = vmatpush2.msra.mxu0 0.0
  %95 = vmatprep.subr.mxu0 0.0
  %96 = vmatpush2.msra.mxu0 0.0
  %97 = vmatprep.subr.mxu0 0.0
  %98 = vmatpush2.msra.mxu0 0.0
  %99 = vmatprep.subr.mxu0 0.0
  %100 = vmatpush2.msra.mxu0 0.0
  %101 = vmatprep.subr.mxu0 0.0
  %102 = vmatpush2.msra.mxu0 0.0
  %103 = vmatprep.subr.mxu0 0.0
  %104 = vmatpush2.msra.mxu0 0.0
  %105 = vmatprep.subr.mxu0 0.0
  %106 = vmatpush2.msra.mxu0 0.0
  %107 = vmatprep.subr.mxu0 0.0
  %108 = vmatpush2.msra.mxu0 0.0
  %109 = vmatprep.subr.mxu0 0.0
  %110 = vmatpush2.msra.mxu0 0.0
  %111 = vmatprep.mubr.f32.mxu0 0.0
  %112 = vmatmul.mubr.f32.gmra.mxu0 %v38
  %v113 = vpop.f32.mrf.mxu0
  %v114 = vadd.f32 0.0, %v113
  %v115 = vpop.f32.mrf.mxu0
  %v116 = vadd.f32 0.0, %v115
  %117 = vdwg.mxu0
  %v119 = vsel %vm36, %v15, 0
  %v122 = vsel %vm40, %v34, 0
  %v125 = vsel %vm40, %v35, 0
  %127 = vmatprep.subr.mxu0 0.0
  %128 = vmatpush1.msra.mxu0 0.0
  %129 = vmatprep.subr.mxu0 0.0
  %130 = vmatpush1.msra.mxu0 0.0
  %131 = vmatprep.subr.mxu0 0.0
  %132 = vmatpush1.msra.mxu0 0.0
  %133 = vmatprep.subr.mxu0 0.0
  %134 = vmatpush1.msra.mxu0 0.0
  %135 = vmatprep.subr.mxu0 0.0
  %136 = vmatpush1.msra.mxu0 0.0
  %137 = vmatprep.subr.mxu0 0.0
  %138 = vmatpush1.msra.mxu0 0.0
  %139 = vmatprep.subr.mxu0 0.0
  %140 = vmatpush1.msra.mxu0 0.0
  %141 = vmatprep.subr.mxu0 0.0
  %142 = vmatpush1.msra.mxu0 0.0
  %143 = vmatprep.subr.mxu0 0.0
  %144 = vmatpush1.msra.mxu0 0.0
  %145 = vmatprep.subr.mxu0 0.0
  %146 = vmatpush1.msra.mxu0 0.0
  %147 = vmatprep.subr.mxu0 0.0
  %148 = vmatpush1.msra.mxu0 0.0
  %149 = vmatprep.subr.mxu0 %v125
  %150 = vmatpush1.msra.mxu0 %v122
  %151 = vmatprep.subr.mxu0 %v33
  %152 = vmatpush1.msra.mxu0 %v32
  %153 = vmatprep.subr.mxu0 %v31
  %154 = vmatpush1.msra.mxu0 %v30
  %155 = vmatprep.subr.mxu0 %v29
  %156 = vmatpush1.msra.mxu0 %v28
  %157 = vmatprep.subr.mxu0 %v27
  %158 = vmatpush1.msra.mxu0 %v26
  %159 = vmatprep.subr.mxu0 0.0
  %160 = vmatpush2.msra.mxu0 0.0
  %161 = vmatprep.subr.mxu0 0.0
  %162 = vmatpush2.msra.mxu0 0.0
  %163 = vmatprep.subr.mxu0 0.0
  %164 = vmatpush2.msra.mxu0 0.0
  %165 = vmatprep.subr.mxu0 0.0
  %166 = vmatpush2.msra.mxu0 0.0
  %167 = vmatprep.subr.mxu0 0.0
  %168 = vmatpush2.msra.mxu0 0.0
  %169 = vmatprep.subr.mxu0 0.0
  %170 = vmatpush2.msra.mxu0 0.0
  %171 = vmatprep.subr.mxu0 0.0
  %172 = vmatpush2.msra.mxu0 0.0
  %173 = vmatprep.subr.mxu0 0.0
  %174 = vmatpush2.msra.mxu0 0.0
  %175 = vmatprep.subr.mxu0 0.0
  %176 = vmatpush2.msra.mxu0 0.0
  %177 = vmatprep.subr.mxu0 0.0
  %178 = vmatpush2.msra.mxu0 0.0
  %179 = vmatprep.subr.mxu0 0.0
  %180 = vmatpush2.msra.mxu0 0.0
  %181 = vmatprep.subr.mxu0 0.0
  %182 = vmatpush2.msra.mxu0 0.0
  %183 = vmatprep.subr.mxu0 0.0
  %184 = vmatpush2.msra.mxu0 0.0
  %185 = vmatprep.subr.mxu0 0.0
  %186 = vmatpush2.msra.mxu0 0.0
  %187 = vmatprep.subr.mxu0 0.0
  %188 = vmatpush2.msra.mxu0 0.0
  %189 = vmatprep.subr.mxu0 0.0
  %190 = vmatpush2.msra.mxu0 0.0
  %191 = vmatprep.mubr.f32.mxu0 0.0
  %192 = vmatmul.mubr.f32.gmra.mxu0 %v119
  %v193 = vpop.f32.mrf.mxu0
  %v194 = vadd.f32 0.0, %v193
  %v195 = vpop.f32.mrf.mxu0
  %v196 = vadd.f32 0.0, %v195
  %197 = vdwg.mxu0
  %v198 = vld [vmem:[%s2] sm:$0xff]
  %v199 = vld [vmem:[%s2 + $0x8] sm:$0xff]
  %v200 = vld [vmem:[%s2 + $0x10] sm:$0xff]
  %v201 = vld [vmem:[%s2 + $0x18] sm:$0xff]
  %v202 = vld [vmem:[%s2 + $0x20] sm:$0xff]
  %v203 = vld [vmem:[%s2 + $0x28] sm:$0xff]
  %v204 = vld [vmem:[%s2 + $0x30] sm:$0xff]
  %v205 = vld [vmem:[%s2 + $0x38] sm:$0xff]
  %v206 = vld [vmem:[%s2 + $0x40] sm:$0xff]
  %v207 = vld [vmem:[%s2 + $0x48] sm:$0xff]
  %v208 = vld [vmem:[%s2 + $0x50] sm:$0xff]
  %v209 = vld [vmem:[%s2 + $0x58] sm:$0xff]
  %v210 = vld [vmem:[%s2 + $0x60] sm:$0xff]
  %v211 = vld [vmem:[%s2 + $0x68] sm:$0xff]
  %v212 = vld [vmem:[%s2 + $0x70] sm:$0xff]
  %v213 = vld [vmem:[%s2 + $0x78] sm:$0xff]
  %v214 = vld [vmem:[%s2 + $0x80] sm:$0xff]
  %v215 = vld [vmem:[%s2 + $0x88] sm:$0xff]
  %v216 = vld [vmem:[%s2 + $0x90] sm:$0xff]
  %v217 = vld [vmem:[%s2 + $0x98] sm:$0xff]
  %v218 = vld [vmem:[%s2 + $0xa0] sm:$0xff]
  %v219 = vld [vmem:[%s2 + $0xa8] sm:$0xff]
  %v220 = vld [vmem:[%s2 + $0xb0] sm:$0xff]
  %v221 = vld [vmem:[%s2 + $0xb8] sm:$0xff]
  %v222 = vld [vmem:[%s2 + $0xc0] sm:$0xff]
  %v223 = vld [vmem:[%s2 + $0xc8] sm:$0xff]
  %v224 = vld [vmem:[%s2 + $0xd0] sm:$0xff]
  %v225 = vld [vmem:[%s2 + $0xd8] sm:$0xff]
  %v226 = vld [vmem:[%s2 + $0xe0] sm:$0xff]
  %v227 = vld [vmem:[%s2 + $0xe8] sm:$0xff]
  %v228 = vld [vmem:[%s2 + $0xf0] sm:$0xff]
  %v229 = vld [vmem:[%s2 + $0xf8] sm:$0xff]
  %v230 = vld [vmem:[%s2 + $0x100] sm:$0xff]
  %v231 = vld [vmem:[%s2 + $0x108] sm:$0xff]
  %v232 = vld [vmem:[%s2 + $0x110] sm:$0xff]
  %v233 = vld [vmem:[%s2 + $0x118] sm:$0xff]
  %v234 = vld [vmem:[%s2 + $0x120] sm:$0xff]
  %v235 = vld [vmem:[%s2 + $0x128] sm:$0xff]
  %v236 = vld [vmem:[%s2 + $0x130] sm:$0xff]
  %v237 = vld [vmem:[%s2 + $0x138] sm:$0xff]
  %v238 = vld [vmem:[%s2 + $0x140] sm:$0xff]
  %v239 = vld [vmem:[%s2 + $0x148] sm:$0xff]
  %v240 = vld [vmem:[%s2 + $0x150] sm:$0xff]
  %v241 = vld [vmem:[%s2 + $0x158] sm:$0xff]
  %v242 = vld [vmem:[%s2 + $0x160] sm:$0xff]
  %v243 = vld [vmem:[%s2 + $0x168] sm:$0xff]
  %v244 = vld [vmem:[%s2 + $0x170] sm:$0xff]
  %v245 = vld [vmem:[%s2 + $0x178] sm:$0xff]
  %v246 = vld [vmem:[%s2 + $0x180] sm:$0xff]
  %v247 = vld [vmem:[%s2 + $0x188] sm:$0xff]
  %v248 = vld [vmem:[%s2 + $0x190] sm:$0xff]
  %v249 = vld [vmem:[%s2 + $0x198] sm:$0xff]
  %v250 = vld [vmem:[%s2 + $0x1a0] sm:$0xff]
  %v251 = vld [vmem:[%s2 + $0x1a8] sm:$0xff]
  %v252 = vld [vmem:[%s2 + $0x1b0] sm:$0xff]
  %v253 = vld [vmem:[%s2 + $0x1b8] sm:$0xff]
  %v254 = vld [vmem:[%s2 + $0x1c0] sm:$0xff]
  %v255 = vld [vmem:[%s2 + $0x1c8] sm:$0xff]
  %v256 = vld [vmem:[%s2 + $0x1d0] sm:$0xff]
  %v257 = vld [vmem:[%s2 + $0x1d8] sm:$0xff]
  %v258 = vld [vmem:[%s2 + $0x1e0] sm:$0xff]
  %v259 = vld [vmem:[%s2 + $0x1e8] sm:$0xff]
  %v260 = vld [vmem:[%s2 + $0x1f0] sm:$0xff]
  %v261 = vld [vmem:[%s2 + $0x1f8] sm:$0xff]
  %v262 = vld [vmem:[%s2 + $0x200] sm:$0xff]
  %v263 = vld [vmem:[%s2 + $0x208] sm:$0xff]
  %v264 = vld [vmem:[%s2 + $0x210] sm:$0xff]
  %v265 = vld [vmem:[%s2 + $0x218] sm:$0xff]
  %v266 = vld [vmem:[%s2 + $0x220] sm:$0xff]
  %v267 = vld [vmem:[%s2 + $0x228] sm:$0xff]
  %v268 = vld [vmem:[%s2 + $0x230] sm:$0xff]
  %v269 = vld [vmem:[%s2 + $0x238] sm:$0xff]
  %v270 = vld [vmem:[%s2 + $0x240] sm:$0xff]
  %v271 = vld [vmem:[%s2 + $0x248] sm:$0xff]
  %v272 = vld [vmem:[%s2 + $0x250] sm:$0xff]
  %v273 = vld [vmem:[%s2 + $0x258] sm:$0xff]
  %v274 = vld [vmem:[%s2 + $0x260] sm:$0xff]
  %v275 = vld [vmem:[%s2 + $0x268] sm:$0xff]
  %v276 = vld [vmem:[%s2 + $0x270] sm:$0xff]
  %v277 = vld [vmem:[%s2 + $0x278] sm:$0xff]
  %v278 = vld [vmem:[%s2 + $0x280] sm:$0xff]
  %v279 = vld [vmem:[%s2 + $0x288] sm:$0xff]
  %v280 = vld [vmem:[%s2 + $0x290] sm:$0xff]
  %v281 = vld [vmem:[%s2 + $0x298] sm:$0xff]
  %v282 = vld [vmem:[%s2 + $0x2a0] sm:$0xff]
  %v283 = vld [vmem:[%s2 + $0x2a8] sm:$0xff]
  %v284 = vld [vmem:[%s2 + $0x2b0] sm:$0xff]
  %v285 = vld [vmem:[%s2 + $0x2b8] sm:$0xff]
  %v286 = vld [vmem:[%s2 + $0x2c0] sm:$0xff]
  %v287 = vld [vmem:[%s2 + $0x2c8] sm:$0xff]
  %v288 = vld [vmem:[%s2 + $0x2d0] sm:$0xff]
  %v289 = vld [vmem:[%s2 + $0x2d8] sm:$0xff]
  %v290 = vld [vmem:[%s2 + $0x2e0] sm:$0xff]
  %v291 = vld [vmem:[%s2 + $0x2e8] sm:$0xff]
  %v292 = vld [vmem:[%s2 + $0x2f0] sm:$0xff]
  %v293 = vld [vmem:[%s2 + $0x2f8] sm:$0xff]
  %v294 = vld [vmem:[%s2 + $0x300] sm:$0xff]
  %v295 = vld [vmem:[%s2 + $0x308] sm:$0xff]
  %v296 = vld [vmem:[%s2 + $0x310] sm:$0xff]
  %v297 = vld [vmem:[%s2 + $0x318] sm:$0xff]
  %v298 = vld [vmem:[%s2 + $0x320] sm:$0xff]
  %v299 = vld [vmem:[%s2 + $0x328] sm:$0xff]
  %v300 = vld [vmem:[%s2 + $0x330] sm:$0xff]
  %v301 = vld [vmem:[%s2 + $0x338] sm:$0xff]
  %v302 = vld [vmem:[%s2 + $0x340] sm:$0xff]
  %v303 = vld [vmem:[%s2 + $0x348] sm:$0xff]
  %v304 = vld [vmem:[%s2 + $0x350] sm:$0xff]
  %v305 = vld [vmem:[%s2 + $0x358] sm:$0xff]
  %v306 = vld [vmem:[%s2 + $0x360] sm:$0xff]
  %v307 = vld [vmem:[%s2 + $0x368] sm:$0xff]
  %v308 = vld [vmem:[%s2 + $0x370] sm:$0xff]
  %v309 = vld [vmem:[%s2 + $0x378] sm:$0xff]
  %v310 = vld [vmem:[%s2 + $0x380] sm:$0xff]
  %v311 = vld [vmem:[%s2 + $0x388] sm:$0xff]
  %v312 = vld [vmem:[%s2 + $0x390] sm:$0xff]
  %v313 = vld [vmem:[%s2 + $0x398] sm:$0xff]
  %v314 = vld [vmem:[%s2 + $0x3a0] sm:$0xff]
  %v315 = vld [vmem:[%s2 + $0x3a8] sm:$0xff]
  %v316 = vld [vmem:[%s2 + $0x3b0] sm:$0xff]
  %v317 = vld [vmem:[%s2 + $0x3b8] sm:$0xff]
  %v318 = vld [vmem:[%s2 + $0x3c0] sm:$0xff]
  %v319 = vld [vmem:[%s2 + $0x3c8] sm:$0xff]
  %v320 = vld [vmem:[%s2 + $0x3d0] sm:$0xff]
  %v321 = vld [vmem:[%s2 + $0x3d8] sm:$0xff]
  %v322 = vld [vmem:[%s2 + $0x3e0] sm:$0xff]
  %v323 = vld [vmem:[%s2 + $0x3e8] sm:$0xff]
  %v324 = vld [vmem:[%s2 + $0x3f0] sm:$0xff]
  %v325 = vld [vmem:[%s2 + $0x3f8] sm:$0xff]
  %v326 = vld [vmem:[%s2 + $0x400] sm:$0xff]
  %v327 = vld [vmem:[%s2 + $0x408] sm:$0xff]
  %v328 = vld [vmem:[%s2 + $0x410] sm:$0xff]
  %v329 = vld [vmem:[%s2 + $0x418] sm:$0xff]
  %v330 = vld [vmem:[%s2 + $0x420] sm:$0xff]
  %v331 = vld [vmem:[%s2 + $0x428] sm:$0xff]
  %v332 = vld [vmem:[%s2 + $0x430] sm:$0xff]
  %v333 = vld [vmem:[%s2 + $0x438] sm:$0xff]
  %v334 = vld [vmem:[%s2 + $0x440] sm:$0xff]
  %v335 = vld [vmem:[%s2 + $0x448] sm:$0xff]
  %v336 = vld [vmem:[%s2 + $0x450] sm:$0xff]
  %v337 = vld [vmem:[%s2 + $0x458] sm:$0xff]
  %v338 = vld [vmem:[%s2 + $0x460] sm:$0xff]
  %v339 = vld [vmem:[%s2 + $0x468] sm:$0xff]
  %v340 = vld [vmem:[%s2 + $0x470] sm:$0xff]
  %v341 = vld [vmem:[%s2 + $0x478] sm:$0xff]
  %v342 = vld [vmem:[%s2 + $0x480] sm:$0xff]
  %v343 = vld [vmem:[%s2 + $0x488] sm:$0xff]
  %v344 = vld [vmem:[%s2 + $0x490] sm:$0xff]
  %v345 = vld [vmem:[%s2 + $0x498] sm:$0xff]
  %v346 = vld [vmem:[%s2 + $0x4a0] sm:$0xff]
  %v347 = vld [vmem:[%s2 + $0x4a8] sm:$0xff]
  %v348 = vld [vmem:[%s2 + $0x4b0] sm:$0xff]
  %v349 = vld [vmem:[%s2 + $0x4b8] sm:$0xff]
  %v350 = vld [vmem:[%s2 + $0x4c0] sm:$0xff]
  %v351 = vld [vmem:[%s2 + $0x4c8] sm:$0xff]
  %v352 = vld [vmem:[%s2 + $0x4d0] sm:$0xff]
  %v353 = vld [vmem:[%s2 + $0x4d8] sm:$0xff]
  %v354 = vld [vmem:[%s2 + $0x4e0] sm:$0xff]
  %v355 = vld [vmem:[%s2 + $0x4e8] sm:$0xff]
  %v356 = vld [vmem:[%s2 + $0x4f0] sm:$0xff]
  %v357 = vld [vmem:[%s2 + $0x4f8] sm:$0xff]
  %v358 = vld [vmem:[%s2 + $0x500] sm:$0xff]
  %v359 = vld [vmem:[%s2 + $0x508] sm:$0xff]
  %v360 = vld [vmem:[%s2 + $0x510] sm:$0xff]
  %v361 = vld [vmem:[%s2 + $0x518] sm:$0xff]
  %v362 = vld [vmem:[%s2 + $0x520] sm:$0xff]
  %v363 = vld [vmem:[%s2 + $0x528] sm:$0xff]
  %v364 = vld [vmem:[%s2 + $0x530] sm:$0xff]
  %v365 = vld [vmem:[%s2 + $0x538] sm:$0xff]
  %v366 = vld [vmem:[%s2 + $0x540] sm:$0xff]
  %v367 = vld [vmem:[%s2 + $0x548] sm:$0xff]
  %v368 = vld [vmem:[%s2 + $0x550] sm:$0xff]
  %v369 = vld [vmem:[%s2 + $0x558] sm:$0xff]
  %v370 = vld [vmem:[%s2 + $0x560] sm:$0xff]
  %v371 = vld [vmem:[%s2 + $0x568] sm:$0xff]
  %v372 = vld [vmem:[%s2 + $0x570] sm:$0xff]
  %v373 = vld [vmem:[%s2 + $0x578] sm:$0xff]
  %v374 = vld [vmem:[%s2 + $0x580] sm:$0xff]
  %v375 = vld [vmem:[%s2 + $0x588] sm:$0xff]
  %v376 = vld [vmem:[%s2 + $0x590] sm:$0xff]
  %v377 = vld [vmem:[%s2 + $0x598] sm:$0xff]
  %v378 = vld [vmem:[%s2 + $0x5a0] sm:$0xff]
  %v379 = vld [vmem:[%s2 + $0x5a8] sm:$0xff]
  %v380 = vld [vmem:[%s2 + $0x5b0] sm:$0xff]
  %v381 = vld [vmem:[%s2 + $0x5b8] sm:$0xff]
  %v382 = vld [vmem:[%s2 + $0x5c0] sm:$0xff]
  %v383 = vld [vmem:[%s2 + $0x5c8] sm:$0xff]
  %v384 = vld [vmem:[%s2 + $0x5d0] sm:$0xff]
  %v385 = vld [vmem:[%s2 + $0x5d8] sm:$0xff]
  %v386 = vld [vmem:[%s2 + $0x5e0] sm:$0xff]
  %v387 = vld [vmem:[%s2 + $0x5e8] sm:$0xff]
  %v388 = vld [vmem:[%s2 + $0x5f0] sm:$0xff]
  %v389 = vld [vmem:[%s2 + $0x5f8] sm:$0xff]
  %v390 = vld [vmem:[%s2 + $0x600] sm:$0xff]
  %v391 = vld [vmem:[%s2 + $0x608] sm:$0xff]
  %v392 = vld [vmem:[%s2 + $0x610] sm:$0xff]
  %v393 = vld [vmem:[%s2 + $0x618] sm:$0xff]
  %v394 = vld [vmem:[%s2 + $0x620] sm:$0xff]
  %v395 = vld [vmem:[%s2 + $0x628] sm:$0xff]
  %v396 = vld [vmem:[%s2 + $0x630] sm:$0xff]
  %v397 = vld [vmem:[%s2 + $0x638] sm:$0xff]
  %v398 = vld [vmem:[%s2 + $0x640] sm:$0xff]
  %v399 = vld [vmem:[%s2 + $0x648] sm:$0xff]
  %v400 = vld [vmem:[%s2 + $0x650] sm:$0xff]
  %v401 = vld [vmem:[%s2 + $0x658] sm:$0xff]
  %v402 = vld [vmem:[%s2 + $0x660] sm:$0xff]
  %v403 = vld [vmem:[%s2 + $0x668] sm:$0xff]
  %v404 = vld [vmem:[%s2 + $0x670] sm:$0xff]
  %v405 = vld [vmem:[%s2 + $0x678] sm:$0xff]
  %v406 = vld [vmem:[%s2 + $0x680] sm:$0xff]
  %v407 = vld [vmem:[%s2 + $0x688] sm:$0xff]
  %v408 = vld [vmem:[%s2 + $0x690] sm:$0xff]
  %v409 = vld [vmem:[%s2 + $0x698] sm:$0xff]
  %v410 = vld [vmem:[%s2 + $0x6a0] sm:$0xff]
  %v411 = vld [vmem:[%s2 + $0x6a8] sm:$0xff]
  %v412 = vld [vmem:[%s2 + $0x6b0] sm:$0xff]
  %v413 = vld [vmem:[%s2 + $0x6b8] sm:$0xff]
  %v414 = vld [vmem:[%s2 + $0x6c0] sm:$0xff]
  %v415 = vld [vmem:[%s2 + $0x6c8] sm:$0xff]
  %v416 = vld [vmem:[%s2 + $0x6d0] sm:$0xff]
  %v417 = vld [vmem:[%s2 + $0x6d8] sm:$0xff]
  %v418 = vld [vmem:[%s2 + $0x6e0] sm:$0xff]
  %v419 = vld [vmem:[%s2 + $0x6e8] sm:$0xff]
  %v420 = vld [vmem:[%s2 + $0x6f0] sm:$0xff]
  %v421 = vld [vmem:[%s2 + $0x6f8] sm:$0xff]
  %v422 = vld [vmem:[%s2 + $0x700] sm:$0xff]
  %v423 = vld [vmem:[%s2 + $0x708] sm:$0xff]
  %v424 = vld [vmem:[%s2 + $0x710] sm:$0xff]
  %v425 = vld [vmem:[%s2 + $0x718] sm:$0xff]
  %v426 = vld [vmem:[%s2 + $0x720] sm:$0xff]
  %v427 = vld [vmem:[%s2 + $0x728] sm:$0xff]
  %v428 = vld [vmem:[%s2 + $0x730] sm:$0xff]
  %v429 = vld [vmem:[%s2 + $0x738] sm:$0xff]
  %v430 = vld [vmem:[%s2 + $0x740] sm:$0xff]
  %v431 = vld [vmem:[%s2 + $0x748] sm:$0xff]
  %v432 = vld [vmem:[%s2 + $0x750] sm:$0xff]
  %v433 = vld [vmem:[%s2 + $0x758] sm:$0xff]
  %v434 = vld [vmem:[%s2 + $0x760] sm:$0xff]
  %v435 = vld [vmem:[%s2 + $0x768] sm:$0xff]
  %v436 = vld [vmem:[%s2 + $0x770] sm:$0xff]
  %v437 = vld [vmem:[%s2 + $0x778] sm:$0xff]
  %v438 = vld [vmem:[%s2 + $0x780] sm:$0xff]
  %v439 = vld [vmem:[%s2 + $0x788] sm:$0xff]
  %v440 = vld [vmem:[%s2 + $0x790] sm:$0xff]
  %v441 = vld [vmem:[%s2 + $0x798] sm:$0xff]
  %v442 = vld [vmem:[%s2 + $0x7a0] sm:$0xff]
  %v443 = vld [vmem:[%s2 + $0x7a8] sm:$0xff]
  %v444 = vld [vmem:[%s2 + $0x7b0] sm:$0xff]
  %v445 = vld [vmem:[%s2 + $0x7b8] sm:$0xff]
  %v446 = vld [vmem:[%s2 + $0x7c0] sm:$0xff]
  %v447 = vld [vmem:[%s2 + $0x7c8] sm:$0xff]
  %v448 = vld [vmem:[%s2 + $0x7d0] sm:$0xff]
  %v449 = vld [vmem:[%s2 + $0x7d8] sm:$0xff]
  %v450 = vld [vmem:[%s2 + $0x7e0] sm:$0xff]
  %v451 = vld [vmem:[%s2 + $0x7e8] sm:$0xff]
  %v452 = vld [vmem:[%s2 + $0x7f0] sm:$0xff]
  %v453 = vld [vmem:[%s2 + $0x7f8] sm:$0xff]
  %454 = vmatprep.subr.mxu0 %v319
  %455 = vmatpush1.msra.mxu0 %v318
  %456 = vmatprep.subr.mxu0 %v311
  %457 = vmatpush1.msra.mxu0 %v310
  %458 = vmatprep.subr.mxu0 %v303
  %459 = vmatpush1.msra.mxu0 %v302
  %460 = vmatprep.subr.mxu0 %v295
  %461 = vmatpush1.msra.mxu0 %v294
  %462 = vmatprep.subr.mxu0 %v287
  %463 = vmatpush1.msra.mxu0 %v286
  %464 = vmatprep.subr.mxu0 %v279
  %465 = vmatpush1.msra.mxu0 %v278
  %466 = vmatprep.subr.mxu0 %v271
  %467 = vmatpush1.msra.mxu0 %v270
  %468 = vmatprep.subr.mxu0 %v263
  %469 = vmatpush1.msra.mxu0 %v262
  %470 = vmatprep.subr.mxu0 %v255
  %471 = vmatpush1.msra.mxu0 %v254
  %472 = vmatprep.subr.mxu0 %v247
  %473 = vmatpush1.msra.mxu0 %v246
  %474 = vmatprep.subr.mxu0 %v239
  %475 = vmatpush1.msra.mxu0 %v238
  %476 = vmatprep.subr.mxu0 %v231
  %477 = vmatpush1.msra.mxu0 %v230
  %478 = vmatprep.subr.mxu0 %v223
  %479 = vmatpush1.msra.mxu0 %v222
  %480 = vmatprep.subr.mxu0 %v215
  %481 = vmatpush1.msra.mxu0 %v214
  %482 = vmatprep.subr.mxu0 %v207
  %483 = vmatpush1.msra.mxu0 %v206
  %484 = vmatprep.subr.mxu0 %v199
  %485 = vmatpush1.msra.mxu0 %v198
  %486 = vmatprep.subr.mxu0 %v447
  %487 = vmatpush2.msra.mxu0 %v446
  %488 = vmatprep.subr.mxu0 %v439
  %489 = vmatpush2.msra.mxu0 %v438
  %490 = vmatprep.subr.mxu0 %v431
  %491 = vmatpush2.msra.mxu0 %v430
  %492 = vmatprep.subr.mxu0 %v423
  %493 = vmatpush2.msra.mxu0 %v422
  %494 = vmatprep.subr.mxu0 %v415
  %495 = vmatpush2.msra.mxu0 %v414
  %496 = vmatprep.subr.mxu0 %v407
  %497 = vmatpush2.msra.mxu0 %v406
  %498 = vmatprep.subr.mxu0 %v399
  %499 = vmatpush2.msra.mxu0 %v398
  %500 = vmatprep.subr.mxu0 %v391
  %501 = vmatpush2.msra.mxu0 %v390
  %502 = vmatprep.subr.mxu0 %v383
  %503 = vmatpush2.msra.mxu0 %v382
  %504 = vmatprep.subr.mxu0 %v375
  %505 = vmatpush2.msra.mxu0 %v374
  %506 = vmatprep.subr.mxu0 %v367
  %507 = vmatpush2.msra.mxu0 %v366
  %508 = vmatprep.subr.mxu0 %v359
  %509 = vmatpush2.msra.mxu0 %v358
  %510 = vmatprep.subr.mxu0 %v351
  %511 = vmatpush2.msra.mxu0 %v350
  %512 = vmatprep.subr.mxu0 %v343
  %513 = vmatpush2.msra.mxu0 %v342
  %514 = vmatprep.subr.mxu0 %v335
  %515 = vmatpush2.msra.mxu0 %v334
  %516 = vmatprep.subr.mxu0 %v327
  %517 = vmatpush2.msra.mxu0 %v326
  %518 = vmatprep.mubr.f32.mxu0 %v116
  %519 = vmatmul.mubr.f32.gmra.mxu0 %v114
  %v520 = vpop.f32.mrf.mxu0
  %v521 = vadd.f32 0.0, %v520
  %v522 = vpop.f32.mrf.mxu0
  %v523 = vadd.f32 0.0, %v522
  %524 = vmatprep.mubr.f32.mxu0 %v196
  %525 = vmatmul.mubr.f32.gmra.mxu0 %v194
  %v526 = vpop.f32.mrf.mxu0
  %v527 = vadd.f32 0.0, %v526
  %v528 = vpop.f32.mrf.mxu0
  %v529 = vadd.f32 0.0, %v528
  %530 = vdwg.mxu0
  %531 = vmatprep.subr.mxu0 %v321
  %532 = vmatpush1.msra.mxu0 %v320
  %533 = vmatprep.subr.mxu0 %v313
  %534 = vmatpush1.msra.mxu0 %v312
  %535 = vmatprep.subr.mxu0 %v305
  %536 = vmatpush1.msra.mxu0 %v304
  %537 = vmatprep.subr.mxu0 %v297
  %538 = vmatpush1.msra.mxu0 %v296
  %539 = vmatprep.subr.mxu0 %v289
  %540 = vmatpush1.msra.mxu0 %v288
  %541 = vmatprep.subr.mxu0 %v281
  %542 = vmatpush1.msra.mxu0 %v280
  %543 = vmatprep.subr.mxu0 %v273
  %544 = vmatpush1.msra.mxu0 %v272
  %545 = vmatprep.subr.mxu0 %v265
  %546 = vmatpush1.msra.mxu0 %v264
  %547 = vmatprep.subr.mxu0 %v257
  %548 = vmatpush1.msra.mxu0 %v256
  %549 = vmatprep.subr.mxu0 %v249
  %550 = vmatpush1.msra.mxu0 %v248
  %551 = vmatprep.subr.mxu0 %v241
  %552 = vmatpush1.msra.mxu0 %v240
  %553 = vmatprep.subr.mxu0 %v233
  %554 = vmatpush1.msra.mxu0 %v232
  %555 = vmatprep.subr.mxu0 %v225
  %556 = vmatpush1.msra.mxu0 %v224
  %557 = vmatprep.subr.mxu0 %v217
  %558 = vmatpush1.msra.mxu0 %v216
  %559 = vmatprep.subr.mxu0 %v209
  %560 = vmatpush1.msra.mxu0 %v208
  %561 = vmatprep.subr.mxu0 %v201
  %562 = vmatpush1.msra.mxu0 %v200
  %563 = vmatprep.subr.mxu0 %v449
  %564 = vmatpush2.msra.mxu0 %v448
  %565 = vmatprep.subr.mxu0 %v441
  %566 = vmatpush2.msra.mxu0 %v440
  %567 = vmatprep.subr.mxu0 %v433
  %568 = vmatpush2.msra.mxu0 %v432
  %569 = vmatprep.subr.mxu0 %v425
  %570 = vmatpush2.msra.mxu0 %v424
  %571 = vmatprep.subr.mxu0 %v417
  %572 = vmatpush2.msra.mxu0 %v416
  %573 = vmatprep.subr.mxu0 %v409
  %574 = vmatpush2.msra.mxu0 %v408
  %575 = vmatprep.subr.mxu0 %v401
  %576 = vmatpush2.msra.mxu0 %v400
  %577 = vmatprep.subr.mxu0 %v393
  %578 = vmatpush2.msra.mxu0 %v392
  %579 = vmatprep.subr.mxu0 %v385
  %580 = vmatpush2.msra.mxu0 %v384
  %581 = vmatprep.subr.mxu0 %v377
  %582 = vmatpush2.msra.mxu0 %v376
  %583 = vmatprep.subr.mxu0 %v369
  %584 = vmatpush2.msra.mxu0 %v368
  %585 = vmatprep.subr.mxu0 %v361
  %586 = vmatpush2.msra.mxu0 %v360
  %587 = vmatprep.subr.mxu0 %v353
  %588 = vmatpush2.msra.mxu0 %v352
  %589 = vmatprep.subr.mxu0 %v345
  %590 = vmatpush2.msra.mxu0 %v344
  %591 = vmatprep.subr.mxu0 %v337
  %592 = vmatpush2.msra.mxu0 %v336
  %593 = vmatprep.subr.mxu0 %v329
  %594 = vmatpush2.msra.mxu0 %v328
  %595 = vmatprep.mubr.f32.mxu0 %v116
  %596 = vmatmul.mubr.f32.gmra.mxu0 %v114
  %v597 = vpop.f32.mrf.mxu0
  %v598 = vadd.f32 0.0, %v597
  %v599 = vpop.f32.mrf.mxu0
  %v600 = vadd.f32 0.0, %v599
  %601 = vmatprep.mubr.f32.mxu0 %v196
  %602 = vmatmul.mubr.f32.gmra.mxu0 %v194
  %v603 = vpop.f32.mrf.mxu0
  %v604 = vadd.f32 0.0, %v603
  %v605 = vpop.f32.mrf.mxu0
  %v606 = vadd.f32 0.0, %v605
  %607 = vdwg.mxu0
  %608 = vmatprep.subr.mxu0 %v323
  %609 = vmatpush1.msra.mxu0 %v322
  %610 = vmatprep.subr.mxu0 %v315
  %611 = vmatpush1.msra.mxu0 %v314
  %612 = vmatprep.subr.mxu0 %v307
  %613 = vmatpush1.msra.mxu0 %v306
  %614 = vmatprep.subr.mxu0 %v299
  %615 = vmatpush1.msra.mxu0 %v298
  %616 = vmatprep.subr.mxu0 %v291
  %617 = vmatpush1.msra.mxu0 %v290
  %618 = vmatprep.subr.mxu0 %v283
  %619 = vmatpush1.msra.mxu0 %v282
  %620 = vmatprep.subr.mxu0 %v275
  %621 = vmatpush1.msra.mxu0 %v274
  %622 = vmatprep.subr.mxu0 %v267
  %623 = vmatpush1.msra.mxu0 %v266
  %624 = vmatprep.subr.mxu0 %v259
  %625 = vmatpush1.msra.mxu0 %v258
  %626 = vmatprep.subr.mxu0 %v251
  %627 = vmatpush1.msra.mxu0 %v250
  %628 = vmatprep.subr.mxu0 %v243
  %629 = vmatpush1.msra.mxu0 %v242
  %630 = vmatprep.subr.mxu0 %v235
  %631 = vmatpush1.msra.mxu0 %v234
  %632 = vmatprep.subr.mxu0 %v227
  %633 = vmatpush1.msra.mxu0 %v226
  %634 = vmatprep.subr.mxu0 %v219
  %635 = vmatpush1.msra.mxu0 %v218
  %636 = vmatprep.subr.mxu0 %v211
  %637 = vmatpush1.msra.mxu0 %v210
  %638 = vmatprep.subr.mxu0 %v203
  %639 = vmatpush1.msra.mxu0 %v202
  %640 = vmatprep.subr.mxu0 %v451
  %641 = vmatpush2.msra.mxu0 %v450
  %642 = vmatprep.subr.mxu0 %v443
  %643 = vmatpush2.msra.mxu0 %v442
  %644 = vmatprep.subr.mxu0 %v435
  %645 = vmatpush2.msra.mxu0 %v434
  %646 = vmatprep.subr.mxu0 %v427
  %647 = vmatpush2.msra.mxu0 %v426
  %648 = vmatprep.subr.mxu0 %v419
  %649 = vmatpush2.msra.mxu0 %v418
  %650 = vmatprep.subr.mxu0 %v411
  %651 = vmatpush2.msra.mxu0 %v410
  %652 = vmatprep.subr.mxu0 %v403
  %653 = vmatpush2.msra.mxu0 %v402
  %654 = vmatprep.subr.mxu0 %v395
  %655 = vmatpush2.msra.mxu0 %v394
  %656 = vmatprep.subr.mxu0 %v387
  %657 = vmatpush2.msra.mxu0 %v386
  %658 = vmatprep.subr.mxu0 %v379
  %659 = vmatpush2.msra.mxu0 %v378
  %660 = vmatprep.subr.mxu0 %v371
  %661 = vmatpush2.msra.mxu0 %v370
  %662 = vmatprep.subr.mxu0 %v363
  %663 = vmatpush2.msra.mxu0 %v362
  %664 = vmatprep.subr.mxu0 %v355
  %665 = vmatpush2.msra.mxu0 %v354
  %666 = vmatprep.subr.mxu0 %v347
  %667 = vmatpush2.msra.mxu0 %v346
  %668 = vmatprep.subr.mxu0 %v339
  %669 = vmatpush2.msra.mxu0 %v338
  %670 = vmatprep.subr.mxu0 %v331
  %671 = vmatpush2.msra.mxu0 %v330
  %672 = vmatprep.mubr.f32.mxu0 %v116
  %673 = vmatmul.mubr.f32.gmra.mxu0 %v114
  %v674 = vpop.f32.mrf.mxu0
  %v675 = vadd.f32 0.0, %v674
  %v676 = vpop.f32.mrf.mxu0
  %v677 = vadd.f32 0.0, %v676
  %678 = vmatprep.mubr.f32.mxu0 %v196
  %679 = vmatmul.mubr.f32.gmra.mxu0 %v194
  %v680 = vpop.f32.mrf.mxu0
  %v681 = vadd.f32 0.0, %v680
  %v682 = vpop.f32.mrf.mxu0
  %v683 = vadd.f32 0.0, %v682
  %684 = vdwg.mxu0
  %685 = vmatprep.subr.mxu0 %v325
  %686 = vmatpush1.msra.mxu0 %v324
  %687 = vmatprep.subr.mxu0 %v317
  %688 = vmatpush1.msra.mxu0 %v316
  %689 = vmatprep.subr.mxu0 %v309
  %690 = vmatpush1.msra.mxu0 %v308
  %691 = vmatprep.subr.mxu0 %v301
  %692 = vmatpush1.msra.mxu0 %v300
  %693 = vmatprep.subr.mxu0 %v293
  %694 = vmatpush1.msra.mxu0 %v292
  %695 = vmatprep.subr.mxu0 %v285
  %696 = vmatpush1.msra.mxu0 %v284
  %697 = vmatprep.subr.mxu0 %v277
  %698 = vmatpush1.msra.mxu0 %v276
  %699 = vmatprep.subr.mxu0 %v269
  %700 = vmatpush1.msra.mxu0 %v268
  %701 = vmatprep.subr.mxu0 %v261
  %702 = vmatpush1.msra.mxu0 %v260
  %703 = vmatprep.subr.mxu0 %v253
  %704 = vmatpush1.msra.mxu0 %v252
  %705 = vmatprep.subr.mxu0 %v245
  %706 = vmatpush1.msra.mxu0 %v244
  %707 = vmatprep.subr.mxu0 %v237
  %708 = vmatpush1.msra.mxu0 %v236
  %709 = vmatprep.subr.mxu0 %v229
  %710 = vmatpush1.msra.mxu0 %v228
  %711 = vmatprep.subr.mxu0 %v221
  %712 = vmatpush1.msra.mxu0 %v220
  %713 = vmatprep.subr.mxu0 %v213
  %714 = vmatpush1.msra.mxu0 %v212
  %715 = vmatprep.subr.mxu0 %v205
  %716 = vmatpush1.msra.mxu0 %v204
  %717 = vmatprep.subr.mxu0 %v453
  %718 = vmatpush2.msra.mxu0 %v452
  %719 = vmatprep.subr.mxu0 %v445
  %720 = vmatpush2.msra.mxu0 %v444
  %721 = vmatprep.subr.mxu0 %v437
  %722 = vmatpush2.msra.mxu0 %v436
  %723 = vmatprep.subr.mxu0 %v429
  %724 = vmatpush2.msra.mxu0 %v428
  %725 = vmatprep.subr.mxu0 %v421
  %726 = vmatpush2.msra.mxu0 %v420
  %727 = vmatprep.subr.mxu0 %v413
  %728 = vmatpush2.msra.mxu0 %v412
  %729 = vmatprep.subr.mxu0 %v405
  %730 = vmatpush2.msra.mxu0 %v404
  %731 = vmatprep.subr.mxu0 %v397
  %732 = vmatpush2.msra.mxu0 %v396
  %733 = vmatprep.subr.mxu0 %v389
  %734 = vmatpush2.msra.mxu0 %v388
  %735 = vmatprep.subr.mxu0 %v381
  %736 = vmatpush2.msra.mxu0 %v380
  %737 = vmatprep.subr.mxu0 %v373
  %738 = vmatpush2.msra.mxu0 %v372
  %739 = vmatprep.subr.mxu0 %v365
  %740 = vmatpush2.msra.mxu0 %v364
  %741 = vmatprep.subr.mxu0 %v357
  %742 = vmatpush2.msra.mxu0 %v356
  %743 = vmatprep.subr.mxu0 %v349
  %744 = vmatpush2.msra.mxu0 %v348
  %745 = vmatprep.subr.mxu0 %v341
  %746 = vmatpush2.msra.mxu0 %v340
  %747 = vmatprep.subr.mxu0 %v333
  %748 = vmatpush2.msra.mxu0 %v332
  %749 = vmatprep.mubr.f32.mxu0 %v116
  %750 = vmatmul.mubr.f32.gmra.mxu0 %v114
  %v751 = vpop.f32.mrf.mxu0
  %v752 = vadd.f32 0.0, %v751
  %v753 = vpop.f32.mrf.mxu0
  %v754 = vadd.f32 0.0, %v753
  %755 = vmatprep.mubr.f32.mxu0 %v196
  %756 = vmatmul.mubr.f32.gmra.mxu0 %v194
  %v757 = vpop.f32.mrf.mxu0
  %v758 = vadd.f32 0.0, %v757
  %v759 = vpop.f32.mrf.mxu0
  %v760 = vadd.f32 0.0, %v759
  %761 = vdwg.mxu0
  %762 = vst [vmem:[%s3] sm:$0xff] %v521
  %763 = vst [vmem:[%s3 + $0x8] sm:$0xff] %v523
  %764 = vst [vmem:[%s3 + $0x10] sm:$0xff] %v598
  %765 = vst [vmem:[%s3 + $0x18] sm:$0xff] %v600
  %766 = vst [vmem:[%s3 + $0x20] sm:$0xff] %v675
  %767 = vst [vmem:[%s3 + $0x28] sm:$0xff] %v677
  %768 = vst [vmem:[%s3 + $0x30] sm:$0xff] %v752
  %769 = vst [vmem:[%s3 + $0x38] sm:$0xff] %v754
  %770 = vst [vmem:[%s3 + $0x40] sm:$0xff] %v527
  %771 = vst [vmem:[%s3 + $0x48] sm:$0xff] %v529
  %772 = vst [vmem:[%s3 + $0x50] sm:$0xff] %v604
  %773 = vst [vmem:[%s3 + $0x58] sm:$0xff] %v606
  %774 = vst [vmem:[%s3 + $0x60] sm:$0xff] %v681
  %775 = vst [vmem:[%s3 + $0x68] sm:$0xff] %v683
  %776 = vst [vmem:[%s3 + $0x70] sm:$0xff] %v758
  %777 = vst [vmem:[%s3 + $0x78] sm:$0xff] %v760
  // Predicated region
  $region14: #{upsample2d_forward.1} parent=0 // pred_check
    _
  $region15: #{upsample2d_forward.1} parent=0 // pred_check_branch
    %779 = sbr.rel (0) target = $region17
  $region16: #{upsample2d_forward.1} parent=0 // pred_region
    _
  $region17: #{upsample2d_forward.1} parent=0 // pred_fallthru
    _
  // Predicated region
  $region18: #{upsample2d_forward.1} parent=0 // pred_check
    _
  $region19: #{upsample2d_forward.1} parent=0 // pred_check_branch
    %781 = sbr.rel (0) target = $region21
  $region20: #{upsample2d_forward.1} parent=0 // pred_region
    _
  $region21: #{upsample2d_forward.1} parent=0 // pred_fallthru
    _

</llo_original>
